<compile_context>
chip_gen: v5e
topology: v5e:2x2
jax: 0.10.0
libtpu: 0.0.40
codegen_flags: <defaults>
</compile_context>

<pallas_src>
import jax
import jax.numpy as jnp
from jax.experimental import pallas as pl
from jax.experimental.pallas import tpu as pltpu


_LANES = 128      # vreg lane width
_SUBLANES = 8     # f32 sublanes per vreg


def _round_up(n, m):
    return ((n + m - 1) // m) * m


def _testnet_kernel(w1_ref, b1_ref, w2_ref, b2_ref, x_ref, o_ref):
    """One batch tile in dense (feature, sublane-rows, 128-lanes) layout.

    x_ref : (3, S, 128) f32 in VMEM   (batch fills sublanes AND lanes)
    o_ref : (4, S, 128) f32/bf16 in VMEM
    w1_ref: (2, 3) f32 in SMEM   (torch fc1.weight layout: (out, in))
    b1_ref: (2,)   f32 in SMEM
    w2_ref: (4, 2) f32 in SMEM
    b2_ref: (4,)   f32 in SMEM
    """
    x0 = x_ref[0]                     # (S, 128) dense tiles
    x1 = x_ref[1]
    x2 = x_ref[2]

    # fc1 + tanh: unrolled scalar*vector FMAs on the VPU, tanh on the EUP
    # (K=3 is far too small for the MXU).
    h0 = jnp.tanh(w1_ref[0, 0] * x0 + w1_ref[0, 1] * x1 + w1_ref[0, 2] * x2
                  + b1_ref[0])
    h1 = jnp.tanh(w1_ref[1, 0] * x0 + w1_ref[1, 1] * x1 + w1_ref[1, 2] * x2
                  + b1_ref[1])

    # fc2: four direct row stores (no sublane-axis concatenate / relayout).
    for j in range(4):
        o_ref[j] = (w2_ref[j, 0] * h0 + w2_ref[j, 1] * h1
                    + b2_ref[j]).astype(o_ref.dtype)


def testnet_forward_feature_major(xt, w1, b1, w2, b2, *, block_samples=None,
                                  out_dtype=jnp.float32):
    """Feature-major fast path: xt (3, B) f32 -> (4, B).

    No wrapper-side transposes: the only extra data movement is padding the
    ragged <128 batch tail (skipped when B already lines up); the
    (3, bp) -> (3, bp//128, 128) reshape is a free contiguous reshape.
    """
    xt = jnp.asarray(xt, jnp.float32)
    w1 = jnp.asarray(w1, jnp.float32)
    b1 = jnp.asarray(b1, jnp.float32).reshape(-1)   # accept (2,) or (1,2)
    w2 = jnp.asarray(w2, jnp.float32)
    b2 = jnp.asarray(b2, jnp.float32).reshape(-1)

    in_f, B = xt.shape
    out_f, hid_f = w2.shape
    assert (in_f, hid_f, out_f) == (3, 2, 4), "unexpected TestNet shapes"

    n128 = pl.cdiv(B, _LANES)            # number of 128-lane column groups
    if block_samples is None:
        # Sublane rows per grid step.  512 rows = 64K samples/step
        # (~3.6 MiB double-buffered with the dense layout: fits every
        # generation's scoped VMEM default, incl. v7x/v5e).  Target >= 8 grid
        # steps so 'parallel' shards across both v7x TCs and the pipeline
        # stays deep; never below one full (8,128) vreg tile.
        s_rows = max(_SUBLANES,
                     min(512, _round_up(pl.cdiv(n128, 8), _SUBLANES)))
    else:
        # Validate/round a user-supplied tile: multiple of 1024 samples so the
        # (S, 128) block obeys the (8,128) divisibility rule; cap the
        # double-buffered footprint at ~7 MiB.
        s_rows = _round_up(max(1, pl.cdiv(int(block_samples), _LANES)),
                           _SUBLANES)
        s_rows = min(max(s_rows, _SUBLANES), 1024)

    n_blocks = pl.cdiv(n128, s_rows)
    bp = n_blocks * s_rows * _LANES      # padded batch (blocks divide evenly)

    if bp != B:
        xt = jnp.pad(xt, ((0, 0), (0, bp - B)))     # zeros stay finite
    x3 = xt.reshape(in_f, bp // _LANES, _LANES)      # free contiguous reshape

    cost = pl.CostEstimate(
        flops=2 * B * (3 * 2 + 2 * 4),
        transcendentals=2 * B,
        bytes_accessed=4 * B * 3 + jnp.dtype(out_dtype).itemsize * B * 4,
    )

    out3 = pl.pallas_call(
        _testnet_kernel,
        out_shape=jax.ShapeDtypeStruct((out_f, bp // _LANES, _LANES),
                                       out_dtype),
        grid=(n_blocks,),
        in_specs=[
            # Tiny parameters in SMEM, read as scalars inside the kernel.
            pl.BlockSpec(memory_space=pltpu.MemorySpace.SMEM),   # w1
            pl.BlockSpec(memory_space=pltpu.MemorySpace.SMEM),   # b1
            pl.BlockSpec(memory_space=pltpu.MemorySpace.SMEM),   # w2
            pl.BlockSpec(memory_space=pltpu.MemorySpace.SMEM),   # b2
            # Activations: dense (feature, sublane-rows, 128-lanes) blocks.
            pl.BlockSpec((in_f, s_rows, _LANES), lambda i: (0, i, 0)),
        ],
        out_specs=pl.BlockSpec((out_f, s_rows, _LANES), lambda i: (0, i, 0)),
        compiler_params=pltpu.CompilerParams(
            dimension_semantics=("parallel",)),   # shards across TCs on v7x
        cost_estimate=cost,
    )(w1, b1, w2, b2, x3)

    return out3.reshape(out_f, bp)[:, :B]


def testnet_forward(x, w1, b1, w2, b2, *, block_samples=None,
                    out_dtype=jnp.float32):
    """Torch-contract adapter: x (B, 3) -> (B, 4) = fc2(tanh(fc1(x))).

    The two transposes here are XLA relayout passes *outside* the kernel; for
    end-to-end bandwidth keep the surrounding model feature-major and call
    `testnet_forward_feature_major` directly.
    """
    x = jnp.asarray(x, jnp.float32)
    out_t = testnet_forward_feature_major(x.T, w1, b1, w2, b2,
                                          block_samples=block_samples,
                                          out_dtype=out_dtype)
    return out_t.T


def reference_forward(x, w1, b1, w2, b2):
    h = jnp.tanh(x @ w1.T + b1.reshape(-1))
    return h @ w2.T + b2.reshape(-1)


if __name__ == "__main__":
    key = jax.random.PRNGKey(0)
    kx, k1, kb1, k2, kb2 = jax.random.split(key, 5)

    # Small test: batch deliberately NOT a multiple of 128 so the ragged-tail
    # padding path is exercised.
    batch = 200
    x = jax.random.normal(kx, (batch, 3), dtype=jnp.float32)
    # torch nn.Linear parameter layout: weight (out, in), bias (out,)
    w1 = jax.random.normal(k1, (2, 3), dtype=jnp.float32) * 0.5
    b1 = jax.random.normal(kb1, (2,), dtype=jnp.float32) * 0.1
    w2 = jax.random.normal(k2, (4, 2), dtype=jnp.float32) * 0.5
    b2 = jax.random.normal(kb2, (4,), dtype=jnp.float32) * 0.1

    ref = reference_forward(x, w1, b1, w2, b2)

    # Torch-layout contract path.
    out = jax.block_until_ready(testnet_forward(x, w1, b1, w2, b2))
    assert out.shape == (batch, 4)
    assert jnp.allclose(out, ref, atol=1e-5, rtol=1e-5), "mismatch vs reference"

    # Zero-relayout feature-major fast path.
    out_fm = jax.block_until_ready(
        testnet_forward_feature_major(x.T, w1, b1, w2, b2))
    assert out_fm.shape == (4, batch)
    assert jnp.allclose(out_fm.T, ref, atol=1e-5, rtol=1e-5), "fm mismatch"

    print("KERNEL_OK")
</pallas_src>

<mosaic_0001>
module attributes {stable_mosaic.version = 11 : i64} {
  func.func @_testnet_kernel(%arg0: i32, %arg1: memref<2x3xf32, #tpu.memory_space<smem>>, %arg2: memref<2xf32, #tpu.memory_space<smem>>, %arg3: memref<4x2xf32, #tpu.memory_space<smem>>, %arg4: memref<4xf32, #tpu.memory_space<smem>>, %arg5: memref<3x8x128xf32, #tpu.memory_space<vmem>>, %arg6: memref<4x8x128xf32, #tpu.memory_space<vmem>>) attributes {dimension_semantics = [#tpu.dimension_semantics<parallel>], iteration_bounds = array<i64: 1>, scalar_prefetch = 0 : i64, scratch_operands = 0 : i64, tpu.core_type = #tpu.core_type<tc>, window_params = [{transform_indices = @transform_0, window_bounds = array<i64: 2, 3>}, {transform_indices = @transform_1, window_bounds = array<i64: 2>}, {transform_indices = @transform_2, window_bounds = array<i64: 4, 2>}, {transform_indices = @transform_3, window_bounds = array<i64: 4>}, {transform_indices = @transform_4, window_bounds = array<i64: 3, 8, 128>}, {transform_indices = @transform_5, window_bounds = array<i64: 4, 8, 128>}]} {
    %c0 = arith.constant 0 : index
    %c0_0 = arith.constant 0 : index
    %c0_1 = arith.constant 0 : index
    %0 = vector.load %arg5[%c0, %c0_0, %c0_1] : memref<3x8x128xf32, #tpu.memory_space<vmem>>, vector<1x8x128xf32>
    %1 = vector.shape_cast %0 : vector<1x8x128xf32> to vector<8x128xf32>
    %c1 = arith.constant 1 : index
    %c0_2 = arith.constant 0 : index
    %c0_3 = arith.constant 0 : index
    %2 = vector.load %arg5[%c1, %c0_2, %c0_3] : memref<3x8x128xf32, #tpu.memory_space<vmem>>, vector<1x8x128xf32>
    %3 = vector.shape_cast %2 : vector<1x8x128xf32> to vector<8x128xf32>
    %c2 = arith.constant 2 : index
    %c0_4 = arith.constant 0 : index
    %c0_5 = arith.constant 0 : index
    %4 = vector.load %arg5[%c2, %c0_4, %c0_5] : memref<3x8x128xf32, #tpu.memory_space<vmem>>, vector<1x8x128xf32>
    %5 = vector.shape_cast %4 : vector<1x8x128xf32> to vector<8x128xf32>
    %c0_6 = arith.constant 0 : index
    %c0_7 = arith.constant 0 : index
    %6 = memref.load %arg1[%c0_6, %c0_7] : memref<2x3xf32, #tpu.memory_space<smem>>
    %7 = vector.broadcast %6 : f32 to vector<8x128xf32>
    %8 = arith.mulf %7, %1 : vector<8x128xf32>
    %c0_8 = arith.constant 0 : index
    %c1_9 = arith.constant 1 : index
    %9 = memref.load %arg1[%c0_8, %c1_9] : memref<2x3xf32, #tpu.memory_space<smem>>
    %10 = vector.broadcast %9 : f32 to vector<8x128xf32>
    %11 = arith.mulf %10, %3 : vector<8x128xf32>
    %12 = arith.addf %8, %11 : vector<8x128xf32>
    %c0_10 = arith.constant 0 : index
    %c2_11 = arith.constant 2 : index
    %13 = memref.load %arg1[%c0_10, %c2_11] : memref<2x3xf32, #tpu.memory_space<smem>>
    %14 = vector.broadcast %13 : f32 to vector<8x128xf32>
    %15 = arith.mulf %14, %5 : vector<8x128xf32>
    %16 = arith.addf %12, %15 : vector<8x128xf32>
    %c0_12 = arith.constant 0 : index
    %17 = memref.load %arg2[%c0_12] : memref<2xf32, #tpu.memory_space<smem>>
    %18 = vector.broadcast %17 : f32 to vector<8x128xf32>
    %19 = arith.addf %16, %18 : vector<8x128xf32>
    %20 = math.tanh %19 : vector<8x128xf32>
    %c1_13 = arith.constant 1 : index
    %c0_14 = arith.constant 0 : index
    %21 = memref.load %arg1[%c1_13, %c0_14] : memref<2x3xf32, #tpu.memory_space<smem>>
    %22 = vector.broadcast %21 : f32 to vector<8x128xf32>
    %23 = arith.mulf %22, %1 : vector<8x128xf32>
    %c1_15 = arith.constant 1 : index
    %c1_16 = arith.constant 1 : index
    %24 = memref.load %arg1[%c1_15, %c1_16] : memref<2x3xf32, #tpu.memory_space<smem>>
    %25 = vector.broadcast %24 : f32 to vector<8x128xf32>
    %26 = arith.mulf %25, %3 : vector<8x128xf32>
    %27 = arith.addf %23, %26 : vector<8x128xf32>
    %c1_17 = arith.constant 1 : index
    %c2_18 = arith.constant 2 : index
    %28 = memref.load %arg1[%c1_17, %c2_18] : memref<2x3xf32, #tpu.memory_space<smem>>
    %29 = vector.broadcast %28 : f32 to vector<8x128xf32>
    %30 = arith.mulf %29, %5 : vector<8x128xf32>
    %31 = arith.addf %27, %30 : vector<8x128xf32>
    %c1_19 = arith.constant 1 : index
    %32 = memref.load %arg2[%c1_19] : memref<2xf32, #tpu.memory_space<smem>>
    %33 = vector.broadcast %32 : f32 to vector<8x128xf32>
    %34 = arith.addf %31, %33 : vector<8x128xf32>
    %35 = math.tanh %34 : vector<8x128xf32>
    %c0_20 = arith.constant 0 : index
    %c0_21 = arith.constant 0 : index
    %36 = memref.load %arg3[%c0_20, %c0_21] : memref<4x2xf32, #tpu.memory_space<smem>>
    %37 = vector.broadcast %36 : f32 to vector<8x128xf32>
    %38 = arith.mulf %37, %20 : vector<8x128xf32>
    %c0_22 = arith.constant 0 : index
    %c1_23 = arith.constant 1 : index
    %39 = memref.load %arg3[%c0_22, %c1_23] : memref<4x2xf32, #tpu.memory_space<smem>>
    %40 = vector.broadcast %39 : f32 to vector<8x128xf32>
    %41 = arith.mulf %40, %35 : vector<8x128xf32>
    %42 = arith.addf %38, %41 : vector<8x128xf32>
    %c0_24 = arith.constant 0 : index
    %43 = memref.load %arg4[%c0_24] : memref<4xf32, #tpu.memory_space<smem>>
    %44 = vector.broadcast %43 : f32 to vector<8x128xf32>
    %45 = arith.addf %42, %44 : vector<8x128xf32>
    %c0_25 = arith.constant 0 : index
    %c0_26 = arith.constant 0 : index
    %c0_27 = arith.constant 0 : index
    %46 = vector.load %arg6[%c0_25, %c0_26, %c0_27] : memref<4x8x128xf32, #tpu.memory_space<vmem>>, vector<1x8x128xf32>
    %47 = vector.shape_cast %46 : vector<1x8x128xf32> to vector<8x128xf32>
    %48 = vector.shape_cast %45 : vector<8x128xf32> to vector<1x8x128xf32>
    tpu.vector_store %arg6[%c0_25, %c0_26, %c0_27], %48 {strides = array<i32>} : memref<4x8x128xf32, #tpu.memory_space<vmem>>, vector<1x8x128xf32>,
    %c1_28 = arith.constant 1 : index
    %c0_29 = arith.constant 0 : index
    %49 = memref.load %arg3[%c1_28, %c0_29] : memref<4x2xf32, #tpu.memory_space<smem>>
    %50 = vector.broadcast %49 : f32 to vector<8x128xf32>
    %51 = arith.mulf %50, %20 : vector<8x128xf32>
    %c1_30 = arith.constant 1 : index
    %c1_31 = arith.constant 1 : index
    %52 = memref.load %arg3[%c1_30, %c1_31] : memref<4x2xf32, #tpu.memory_space<smem>>
    %53 = vector.broadcast %52 : f32 to vector<8x128xf32>
    %54 = arith.mulf %53, %35 : vector<8x128xf32>
    %55 = arith.addf %51, %54 : vector<8x128xf32>
    %c1_32 = arith.constant 1 : index
    %56 = memref.load %arg4[%c1_32] : memref<4xf32, #tpu.memory_space<smem>>
    %57 = vector.broadcast %56 : f32 to vector<8x128xf32>
    %58 = arith.addf %55, %57 : vector<8x128xf32>
    %c1_33 = arith.constant 1 : index
    %c0_34 = arith.constant 0 : index
    %c0_35 = arith.constant 0 : index
    %59 = vector.load %arg6[%c1_33, %c0_34, %c0_35] : memref<4x8x128xf32, #tpu.memory_space<vmem>>, vector<1x8x128xf32>
    %60 = vector.shape_cast %59 : vector<1x8x128xf32> to vector<8x128xf32>
    %61 = vector.shape_cast %58 : vector<8x128xf32> to vector<1x8x128xf32>
    tpu.vector_store %arg6[%c1_33, %c0_34, %c0_35], %61 {strides = array<i32>} : memref<4x8x128xf32, #tpu.memory_space<vmem>>, vector<1x8x128xf32>,
    %c2_36 = arith.constant 2 : index
    %c0_37 = arith.constant 0 : index
    %62 = memref.load %arg3[%c2_36, %c0_37] : memref<4x2xf32, #tpu.memory_space<smem>>
    %63 = vector.broadcast %62 : f32 to vector<8x128xf32>
    %64 = arith.mulf %63, %20 : vector<8x128xf32>
    %c2_38 = arith.constant 2 : index
    %c1_39 = arith.constant 1 : index
    %65 = memref.load %arg3[%c2_38, %c1_39] : memref<4x2xf32, #tpu.memory_space<smem>>
    %66 = vector.broadcast %65 : f32 to vector<8x128xf32>
    %67 = arith.mulf %66, %35 : vector<8x128xf32>
    %68 = arith.addf %64, %67 : vector<8x128xf32>
    %c2_40 = arith.constant 2 : index
    %69 = memref.load %arg4[%c2_40] : memref<4xf32, #tpu.memory_space<smem>>
    %70 = vector.broadcast %69 : f32 to vector<8x128xf32>
    %71 = arith.addf %68, %70 : vector<8x128xf32>
    %c2_41 = arith.constant 2 : index
    %c0_42 = arith.constant 0 : index
    %c0_43 = arith.constant 0 : index
    %72 = vector.load %arg6[%c2_41, %c0_42, %c0_43] : memref<4x8x128xf32, #tpu.memory_space<vmem>>, vector<1x8x128xf32>
    %73 = vector.shape_cast %72 : vector<1x8x128xf32> to vector<8x128xf32>
    %74 = vector.shape_cast %71 : vector<8x128xf32> to vector<1x8x128xf32>
    tpu.vector_store %arg6[%c2_41, %c0_42, %c0_43], %74 {strides = array<i32>} : memref<4x8x128xf32, #tpu.memory_space<vmem>>, vector<1x8x128xf32>,
    %c3 = arith.constant 3 : index
    %c0_44 = arith.constant 0 : index
    %75 = memref.load %arg3[%c3, %c0_44] : memref<4x2xf32, #tpu.memory_space<smem>>
    %76 = vector.broadcast %75 : f32 to vector<8x128xf32>
    %77 = arith.mulf %76, %20 : vector<8x128xf32>
    %c3_45 = arith.constant 3 : index
    %c1_46 = arith.constant 1 : index
    %78 = memref.load %arg3[%c3_45, %c1_46] : memref<4x2xf32, #tpu.memory_space<smem>>
    %79 = vector.broadcast %78 : f32 to vector<8x128xf32>
    %80 = arith.mulf %79, %35 : vector<8x128xf32>
    %81 = arith.addf %77, %80 : vector<8x128xf32>
    %c3_47 = arith.constant 3 : index
    %82 = memref.load %arg4[%c3_47] : memref<4xf32, #tpu.memory_space<smem>>
    %83 = vector.broadcast %82 : f32 to vector<8x128xf32>
    %84 = arith.addf %81, %83 : vector<8x128xf32>
    %c3_48 = arith.constant 3 : index
    %c0_49 = arith.constant 0 : index
    %c0_50 = arith.constant 0 : index
    %85 = vector.load %arg6[%c3_48, %c0_49, %c0_50] : memref<4x8x128xf32, #tpu.memory_space<vmem>>, vector<1x8x128xf32>
    %86 = vector.shape_cast %85 : vector<1x8x128xf32> to vector<8x128xf32>
    %87 = vector.shape_cast %84 : vector<8x128xf32> to vector<1x8x128xf32>
    tpu.vector_store %arg6[%c3_48, %c0_49, %c0_50], %87 {strides = array<i32>} : memref<4x8x128xf32, #tpu.memory_space<vmem>>, vector<1x8x128xf32>,
    return
  }
  func.func @transform_0(%arg0: i32) -> (i32, i32) {
    %c0_i32 = arith.constant 0 : i32
    %c0_i32_0 = arith.constant 0 : i32
    %c0_i32_1 = arith.constant 0 : i32
    return %c0_i32, %c0_i32_0 : i32, i32
  }
  func.func @transform_1(%arg0: i32) -> i32 {
    %c0_i32 = arith.constant 0 : i32
    %c0_i32_0 = arith.constant 0 : i32
    return %c0_i32 : i32
  }
  func.func @transform_2(%arg0: i32) -> (i32, i32) {
    %c0_i32 = arith.constant 0 : i32
    %c0_i32_0 = arith.constant 0 : i32
    %c0_i32_1 = arith.constant 0 : i32
    return %c0_i32, %c0_i32_0 : i32, i32
  }
  func.func @transform_3(%arg0: i32) -> i32 {
    %c0_i32 = arith.constant 0 : i32
    %c0_i32_0 = arith.constant 0 : i32
    return %c0_i32 : i32
  }
  func.func @transform_4(%arg0: i32) -> (i32, i32, i32) {
    %c0_i32 = arith.constant 0 : i32
    %c0_i32_0 = arith.constant 0 : i32
    %c0_i32_1 = arith.constant 0 : i32
    return %c0_i32, %arg0, %c0_i32_0 : i32, i32, i32
  }
  func.func @transform_5(%arg0: i32) -> (i32, i32, i32) {
    %c0_i32 = arith.constant 0 : i32
    %c0_i32_0 = arith.constant 0 : i32
    %c0_i32_1 = arith.constant 0 : i32
    return %c0_i32, %arg0, %c0_i32_0 : i32, i32, i32
  }
}

</mosaic_0001>

<llo_original>
// kernel: tpu_custom_call.1
$region0: #{tpu_custom_call.1}
  #allocation0 [shape = 'u32[]', space=smem, size = 0x4, offset = 0x4, fixed_abs, tag = 'smem constant byte address 0x4 - core index']
  #allocation1 [shape = 'u32[72,128]{1,0:T(1,128)}', space=vmem, size = 0x9000, scoped, tag = 'internal scratch']
  %s0 = inlined_call_operand.vmem [shape: f32[2,3], index: 0, kind: input, shape index: {}]
  %s1 = inlined_call_operand.vmem [shape: f32[2], index: 1, kind: input, shape index: {}]
  %s2 = inlined_call_operand.vmem [shape: f32[4,2], index: 2, kind: input, shape index: {}]
  %s3 = inlined_call_operand.vmem [shape: f32[4], index: 3, kind: input, shape index: {}]
  %s4 = inlined_call_operand.hbm [shape: f32[3,8,128], index: 4, kind: input, shape index: {}]
  %s5 = inlined_call_operand.hbm [shape: f32[4,8,128], index: 5, kind: output, shape index: {}]
  %s6 = sld [smem:[#allocation0]]
  $region50: #{tpu_custom_call.1} parent=0
    _
  %s8 = ssub.s32 1, %s6
  %s9 = scalar_select 0, %s8, %s6
  $region1: #{tpu_custom_call.1} parent=0
    #allocation2 [shape = 'u8[1024]{0}', space=smem, size = 0x400, scoped, tag = 'input window, operand 0, single buffered']
    #allocation3 [shape = 's32[1]{0}', space=sflag, size = 0x4, scoped, tag = 'scoped memory for tpu_custom_call.1']
    #allocation4 [shape = 's32[1]{0}', space=sflag, size = 0x4, scoped, tag = 'scoped memory for tpu_custom_call.1']
    #allocation5 [shape = 's32[1]{0}', space=sflag, size = 0x4, scoped, tag = 'scoped memory for tpu_custom_call.1']
    #allocation6 [shape = 'u8[512]{0}', space=smem, size = 0x200, scoped, tag = 'input window, operand 1, single buffered']
    #allocation7 [shape = 's32[1]{0}', space=sflag, size = 0x4, scoped, tag = 'scoped memory for tpu_custom_call.1']
    #allocation8 [shape = 'u8[2048]{0}', space=smem, size = 0x800, scoped, tag = 'input window, operand 2, single buffered']
    #allocation9 [shape = 'u8[512]{0}', space=smem, size = 0x200, scoped, tag = 'input window, operand 3, single buffered']
    #allocation10 [shape = 's32[1]{0}', space=sflag, size = 0x4, scoped, tag = 'scoped memory for tpu_custom_call.1']
    #allocation11 [shape = 'u8[12288]{0}', space=vmem, size = 0x3000, scoped, tag = 'input window, operand 4, single buffered']
    #allocation12 [shape = 'u8[16384]{0}', space=vmem, size = 0x4000, scoped, tag = 'output window, operand 0, single buffered']
    %10 = vsyncpa [#allocation5], 0
    %11 = vsyncpa [#allocation7], 0
    %12 = vsyncpa [#allocation10], 0
    %13 = vsyncpa [#allocation3], 0
    %14 = vsyncpa [#allocation4], 0
    // Predicated region
    $region2: #{tpu_custom_call.1} parent=1 // pred_check
      _
    $region3: #{tpu_custom_call.1} parent=1 // pred_check_branch
      %16 = sbr.rel (0) target = $region5
    $region4: #{tpu_custom_call.1} parent=1 // pred_region
      %18 = vsyncadd [#allocation5], 0
      %s20 = sshll.u32 %s0, 4
      %s21 = int_to_ptr.vmem [resolvable:$true] %s20
      %23 = dma.vmem_to_smem %s21, 32, [#allocation2], [#allocation5]
    $region5: #{tpu_custom_call.1} parent=1 // pred_fallthru
      _
    // Predicated region
    $region6: #{tpu_custom_call.1} parent=1 // pred_check
      _
    $region7: #{tpu_custom_call.1} parent=1 // pred_check_branch
      %25 = sbr.rel (0) target = $region9
    $region8: #{tpu_custom_call.1} parent=1 // pred_region
      %27 = vsyncadd [#allocation7], 0
      %s29 = sshll.u32 %s1, 4
      %s30 = int_to_ptr.vmem [resolvable:$true] %s29
      %32 = dma.vmem_to_smem %s30, 16, [#allocation6], [#allocation7]
    $region9: #{tpu_custom_call.1} parent=1 // pred_fallthru
      _
    // Predicated region
    $region10: #{tpu_custom_call.1} parent=1 // pred_check
      _
    $region11: #{tpu_custom_call.1} parent=1 // pred_check_branch
      %34 = sbr.rel (0) target = $region13
    $region12: #{tpu_custom_call.1} parent=1 // pred_region
      %36 = vsyncadd [#allocation7], 0
      %s38 = sshll.u32 %s2, 4
      %s39 = int_to_ptr.vmem [resolvable:$true] %s38
      %41 = dma.vmem_to_smem %s39, 64, [#allocation8], [#allocation7]
    $region13: #{tpu_custom_call.1} parent=1 // pred_fallthru
      _
    // Predicated region
    $region14: #{tpu_custom_call.1} parent=1 // pred_check
      _
    $region15: #{tpu_custom_call.1} parent=1 // pred_check_branch
      %43 = sbr.rel (0) target = $region17
    $region16: #{tpu_custom_call.1} parent=1 // pred_region
      %45 = vsyncadd [#allocation10], 0
      %s47 = sshll.u32 %s3, 4
      %s48 = int_to_ptr.vmem [resolvable:$true] %s47
      %50 = dma.vmem_to_smem %s48, 16, [#allocation9], [#allocation10]
    $region17: #{tpu_custom_call.1} parent=1 // pred_fallthru
      _
    // Predicated region
    $region18: #{tpu_custom_call.1} parent=1 // pred_check
      _
    $region19: #{tpu_custom_call.1} parent=1 // pred_check_branch
      %52 = sbr.rel (0) target = $region21
    $region20: #{tpu_custom_call.1} parent=1 // pred_region
      %54 = vsyncadd [#allocation3], 0
      %s55 = sshll.u32 %s4, 4
      %s56 = int_to_ptr.hbm [resolvable:$true] %s55
      %s57 = sshll.u32 [#allocation11], 4
      %s58 = int_to_ptr.vmem [resolvable:$true] %s57
      %63 = dma.hbm_to_vmem [thread:$0]  %s56, 384, %s58, [#allocation3], 128, 128, 8
    $region21: #{tpu_custom_call.1} parent=1 // pred_fallthru
      _
    // Predicated region
    $region22: #{tpu_custom_call.1} parent=1 // pred_check
      _
    $region23: #{tpu_custom_call.1} parent=1 // pred_check_branch
      %65 = sbr.rel (0) target = $region25
    $region24: #{tpu_custom_call.1} parent=1 // pred_region
      %67 = dma.done [#allocation5], 32
    $region25: #{tpu_custom_call.1} parent=1 // pred_fallthru
      _
    // Predicated region
    $region26: #{tpu_custom_call.1} parent=1 // pred_check
      _
    $region27: #{tpu_custom_call.1} parent=1 // pred_check_branch
      %69 = sbr.rel (0) target = $region29
    $region28: #{tpu_custom_call.1} parent=1 // pred_region
      %71 = dma.done [#allocation7], 16
    $region29: #{tpu_custom_call.1} parent=1 // pred_fallthru
      _
    // Predicated region
    $region30: #{tpu_custom_call.1} parent=1 // pred_check
      _
    $region31: #{tpu_custom_call.1} parent=1 // pred_check_branch
      %73 = sbr.rel (0) target = $region33
    $region32: #{tpu_custom_call.1} parent=1 // pred_region
      %75 = dma.done [#allocation7], 64
    $region33: #{tpu_custom_call.1} parent=1 // pred_fallthru
      _
    // Predicated region
    $region34: #{tpu_custom_call.1} parent=1 // pred_check
      _
    $region35: #{tpu_custom_call.1} parent=1 // pred_check_branch
      %77 = sbr.rel (0) target = $region37
    $region36: #{tpu_custom_call.1} parent=1 // pred_region
      %79 = dma.done [#allocation10], 16
    $region37: #{tpu_custom_call.1} parent=1 // pred_fallthru
      _
    // Predicated region
    $region38: #{tpu_custom_call.1} parent=1 // pred_check
      _
    $region39: #{tpu_custom_call.1} parent=1 // pred_check_branch
      %81 = sbr.rel (0) target = $region41
    $region40: #{tpu_custom_call.1} parent=1 // pred_region
      %83 = dma.done [#allocation3], 384
    $region41: #{tpu_custom_call.1} parent=1 // pred_fallthru
      _
    %84 = sfence
    %v85 = vld [vmem:[#allocation11] sm:$0xff]
    %s86 = scalar_lea.vmem [#allocation11], 8
    %v87 = vld [vmem:[%s86] sm:$0xff]
    %s88 = scalar_lea.vmem [#allocation11], 16
    %v89 = vld [vmem:[%s88] sm:$0xff]
    %s90 = sld [smem:[#allocation2]]
    %v91 = vstv %s90
    %v92 = vmul.f32 %v91, %v85
    %s93 = sld [smem:[#allocation2 + $0x1]]
    %v94 = vstv %s93
    %v95 = vmul.f32 %v94, %v87
    %v96 = vadd.f32 %v92, %v95
    %s97 = sld [smem:[#allocation2 + $0x2]]
    %v98 = vstv %s97
    %v99 = vmul.f32 %v98, %v89
    %v100 = vadd.f32 %v96, %v99
    %s101 = sld [smem:[#allocation6]]
    %v102 = vstv %s101
    %v103 = vadd.f32 %v100, %v102
    %v104 = vtanh.pop %v103
    %s105 = sld [smem:[#allocation2 + $0x80]]
    %v106 = vstv %s105
    %v107 = vmul.f32 %v106, %v85
    %s108 = sld [smem:[#allocation2 + $0x81]]
    %v109 = vstv %s108
    %v110 = vmul.f32 %v109, %v87
    %v111 = vadd.f32 %v107, %v110
    %s112 = sld [smem:[#allocation2 + $0x82]]
    %v113 = vstv %s112
    %v114 = vmul.f32 %v113, %v89
    %v115 = vadd.f32 %v111, %v114
    %s116 = sld [smem:[#allocation6 + $0x1]]
    %v117 = vstv %s116
    %v118 = vadd.f32 %v115, %v117
    %v119 = vtanh.pop %v118
    %s120 = sld [smem:[#allocation8]]
    %v121 = vstv %s120
    %v122 = vmul.f32 %v121, %v104
    %s123 = sld [smem:[#allocation8 + $0x1]]
    %v124 = vstv %s123
    %v125 = vmul.f32 %v124, %v119
    %v126 = vadd.f32 %v122, %v125
    %s127 = sld [smem:[#allocation9]]
    %v128 = vstv %s127
    %v129 = vadd.f32 %v126, %v128
    %130 = vst [vmem:[#allocation12] sm:$0xff] %v129
    %s131 = sld [smem:[#allocation8 + $0x80]]
    %v132 = vstv %s131
    %v133 = vmul.f32 %v132, %v104
    %s134 = sld [smem:[#allocation8 + $0x81]]
    %v135 = vstv %s134
    %v136 = vmul.f32 %v135, %v119
    %v137 = vadd.f32 %v133, %v136
    %s138 = sld [smem:[#allocation9 + $0x1]]
    %v139 = vstv %s138
    %v140 = vadd.f32 %v137, %v139
    %s141 = scalar_lea.vmem [#allocation12], 8
    %142 = vst [vmem:[%s141] sm:$0xff] %v140
    %s143 = sld [smem:[#allocation8 + $0x100]]
    %v144 = vstv %s143
    %v145 = vmul.f32 %v144, %v104
    %s146 = sld [smem:[#allocation8 + $0x101]]
    %v147 = vstv %s146
    %v148 = vmul.f32 %v147, %v119
    %v149 = vadd.f32 %v145, %v148
    %s150 = sld [smem:[#allocation9 + $0x2]]
    %v151 = vstv %s150
    %v152 = vadd.f32 %v149, %v151
    %s153 = scalar_lea.vmem [#allocation12], 16
    %154 = vst [vmem:[%s153] sm:$0xff] %v152
    %s155 = sld [smem:[#allocation8 + $0x180]]
    %v156 = vstv %s155
    %v157 = vmul.f32 %v156, %v104
    %s158 = sld [smem:[#allocation8 + $0x181]]
    %v159 = vstv %s158
    %v160 = vmul.f32 %v159, %v119
    %v161 = vadd.f32 %v157, %v160
    %s162 = sld [smem:[#allocation9 + $0x3]]
    %v163 = vstv %s162
    %v164 = vadd.f32 %v161, %v163
    %s165 = scalar_lea.vmem [#allocation12], 24
    %166 = vst [vmem:[%s165] sm:$0xff] %v164
    // Predicated region
    $region42: #{tpu_custom_call.1} parent=1 // pred_check
      _
    $region43: #{tpu_custom_call.1} parent=1 // pred_check_branch
      %168 = sbr.rel (0) target = $region45
    $region44: #{tpu_custom_call.1} parent=1 // pred_region
      %170 = vsyncadd [#allocation4], 0
      %s171 = sshll.u32 [#allocation12], 4
      %s172 = int_to_ptr.vmem [resolvable:$true] %s171
      %s173 = sshll.u32 %s5, 4
      %s174 = int_to_ptr.hbm [resolvable:$true] %s173
      %179 = dma.vmem_to_hbm [thread:$0]  %s172, 512, %s174, [#allocation4], 128, 128, 8
    $region45: #{tpu_custom_call.1} parent=1 // pred_fallthru
      _
    // Predicated region
    $region46: #{tpu_custom_call.1} parent=1 // pred_check
      _
    $region47: #{tpu_custom_call.1} parent=1 // pred_check_branch
      %181 = sbr.rel (0) target = $region49
    $region48: #{tpu_custom_call.1} parent=1 // pred_region
      %183 = dma.done [#allocation4], 512
    $region49: #{tpu_custom_call.1} parent=1 // pred_fallthru
      _
    %184 = vsyncpa [#allocation3], 1
    %185 = vsyncpa [#allocation4], 1
    %186 = vsyncpa [#allocation5], 1
    %187 = vsyncpa [#allocation7], 1
    %188 = vsyncpa [#allocation10], 1

</llo_original>
